<compile_context>
chip_gen: v7x
topology: tpu7x:2x2x1
jax: 0.10.0
libtpu: 0.0.40
codegen_flags: <defaults>
</compile_context>

<pallas_src>
import functools
import math

import jax
import jax.numpy as jnp
from jax.experimental import pallas as pl
from jax.experimental.pallas import tpu as pltpu

_MiB = 1024 * 1024


def _sdpa_kernel(q_ref, k_ref, v_ref, bias_ref, ctx_ref, attn_ref, *, scale):
    # q_ref: (T, lq, Dk), k_ref: (T, Lk, Dk), v_ref: (T, Lk, Dv)
    # bias_ref: (1 or T, lq, Lk) f32 additive bias (0 for keep, -1e9 for masked)
    q = q_ref[...]                    # keep input dtype -> native bf16 MXU path if bf16
    k = k_ref[...]
    v = v_ref[...]
    bias = bias_ref[...]              # f32

    # scores = Q @ K^T (f32 accumulate), scale + mask applied on the f32 scores.
    scores = jnp.einsum("bqd,bkd->bqk", q, k, preferred_element_type=jnp.float32)
    scores = scores * scale + bias    # single vadd per element for masking
    # NOTE: with an additive -1e9 bias, fully-masked rows give softmax over the raw
    # scores rather than PyTorch's uniform 1/Lk; both are degenerate. Partially
    # masked rows match the reference exactly (masked probs underflow to 0 in f32).

    # numerically stable softmax over the last axis (exact divide for parity)
    mx = jnp.max(scores, axis=-1, keepdims=True)
    e = jnp.exp(scores - mx)
    denom = jnp.sum(e, axis=-1, keepdims=True)
    attn = e / denom

    # TODO(synk): nn.Dropout(config.dropout) is identity in eval mode; training-mode
    # stochastic dropout (pltpu.prng_*) intentionally not applied here.

    # context = attn @ V -- feed the MXU in V's dtype (bf16-friendly), accumulate f32.
    ctx = jnp.einsum("bqk,bkd->bqd", attn.astype(v.dtype), v,
                     preferred_element_type=jnp.float32)

    attn_ref[...] = attn.astype(attn_ref.dtype)
    ctx_ref[...] = ctx.astype(ctx_ref.dtype)


def _vmem_capacity_bytes():
    try:
        info = pltpu.get_tpu_info()
        cap = getattr(info, "vmem_capacity_bytes", None)
        if cap:
            return int(cap)
    except Exception:
        pass
    return 128 * _MiB


def _pick_tiles(BH, Lq, Lk, Dk, Dv, itemsize, mask_shared, budget, min_steps=4):
    """Pick (bh_tile, lq_tile) so the per-step working set fits `budget` and the
    grid keeps >= min_steps steps (pipeline overlap / megacore sharding)."""

    def step_bytes(T, lq):
        mask_rows = 1 if mask_shared else T
        b = 2 * T * (lq * Dk + Lk * Dk + Lk * Dv) * itemsize   # Q, K, V (double-buffered)
        b += 2 * mask_rows * lq * Lk * 4                        # f32 bias (double-buffered)
        b += 2 * T * (lq * Dv + lq * Lk) * itemsize             # ctx / attn outputs (double-buffered)
        b += 4 * T * lq * Lk * 4                                # live f32 scores/exp/attn temporaries
        b += T * lq * Dv * 4                                    # f32 context accumulator
        return b

    # Lq tile: full Lq when small, otherwise the largest multiple of 8 (<= 512)
    # whose T=1 working set fits the budget.
    candidates = ([Lq] if Lq <= 512 else []) + [t for t in (512, 256, 128, 64, 32, 16, 8) if t < Lq]
    lq_tile = candidates[-1]
    for t in candidates:
        if step_bytes(1, t) <= budget:
            lq_tile = t
            break
    nq = pl.cdiv(Lq, lq_tile)

    # BH tile: largest that fits the budget while keeping >= min_steps grid steps.
    nb_min = min(BH, pl.cdiv(min_steps, nq))
    bh_tile = 1
    for t in range(1, BH + 1):
        if step_bytes(t, lq_tile) <= budget and pl.cdiv(BH, t) >= nb_min:
            bh_tile = t
    return bh_tile, lq_tile


def scaled_dot_product_attention(Q, K, V, attn_mask, d_k):
    """Q,K: [B,H,Lq/Lk,d_k], V: [B,H,Lk,d_v].
    attn_mask: bool, broadcastable to [B,H,Lq,Lk] (True = masked out)."""
    B, H, Lq, Dk = Q.shape
    Lk = K.shape[2]
    Dv = V.shape[3]
    BH = B * H

    q = Q.reshape(BH, Lq, Dk)
    k = K.reshape(BH, Lk, Dk)
    v = V.reshape(BH, Lk, Dv)

    # ---- mask -> deduplicated f32 additive bias -----------------------------
    m = jnp.asarray(attn_mask)
    if m.ndim < 4:
        m = m.reshape((1,) * (4 - m.ndim) + m.shape)
    m = jnp.broadcast_to(m, (m.shape[0], m.shape[1], Lq, Lk))
    mask_shared = (m.shape[0] == 1 and m.shape[1] == 1)
    if mask_shared:
        mask_bh = m.reshape(1, Lq, Lk)           # single slab, no B*H replication in HBM
    else:
        mask_bh = jnp.broadcast_to(m, (B, H, Lq, Lk)).reshape(BH, Lq, Lk)
    bias = jnp.where(mask_bh, -1e9, 0.0).astype(jnp.float32)

    # ---- generation-aware VMEM budget & tiling -------------------------------
    cap = _vmem_capacity_bytes()
    if cap <= 80 * _MiB:            # v7x-class: 64 MiB VMEM per TensorCore
        budget, vmem_limit = 28 * _MiB, 52 * _MiB
    else:                           # v5e / v6e: 128 MiB VMEM
        budget, vmem_limit = 88 * _MiB, 100 * _MiB

    itemsize = jnp.dtype(Q.dtype).itemsize
    bh_tile, lq_tile = _pick_tiles(BH, Lq, Lk, Dk, Dv, itemsize, mask_shared, budget)
    grid = (pl.cdiv(BH, bh_tile), pl.cdiv(Lq, lq_tile))   # Lq axis last -> K/V blocks reused

    if mask_shared:
        bias_spec = pl.BlockSpec((1, lq_tile, Lk), lambda i, j: (0, j, 0))
    else:
        bias_spec = pl.BlockSpec((bh_tile, lq_tile, Lk), lambda i, j: (i, j, 0))

    scale = 1.0 / math.sqrt(d_k)
    kernel = functools.partial(_sdpa_kernel, scale=scale)

    ctx_flat, attn_flat = pl.pallas_call(
        kernel,
        out_shape=(
            jax.ShapeDtypeStruct((BH, Lq, Dv), Q.dtype),
            jax.ShapeDtypeStruct((BH, Lq, Lk), Q.dtype),
        ),
        grid_spec=pltpu.PrefetchScalarGridSpec(
            num_scalar_prefetch=0,
            grid=grid,
            in_specs=[
                pl.BlockSpec((bh_tile, lq_tile, Dk), lambda i, j: (i, j, 0)),
                pl.BlockSpec((bh_tile, Lk, Dk), lambda i, j: (i, 0, 0)),
                pl.BlockSpec((bh_tile, Lk, Dv), lambda i, j: (i, 0, 0)),
                bias_spec,
            ],
            out_specs=(
                pl.BlockSpec((bh_tile, lq_tile, Dv), lambda i, j: (i, j, 0)),
                pl.BlockSpec((bh_tile, lq_tile, Lk), lambda i, j: (i, j, 0)),
            ),
        ),
        compiler_params=pltpu.CompilerParams(
            dimension_semantics=("parallel", "parallel"),
            vmem_limit_bytes=vmem_limit,
        ),
    )(q, k, v, bias)

    context = ctx_flat.reshape(B, H, Lq, Dv)
    attn = attn_flat.reshape(B, H, Lq, Lk)
    return context, attn


def _reference(Q, K, V, attn_mask, d_k):
    scores = jnp.einsum("bhqd,bhkd->bhqk", Q, K) / math.sqrt(d_k)
    scores = jnp.where(attn_mask, -1e9, scores)
    attn = jax.nn.softmax(scores, axis=-1)
    context = jnp.einsum("bhqk,bhkd->bhqd", attn, V)
    return context, attn


if __name__ == "__main__":
    # small config consistent with the module: batch=2, n_heads=4, seq=8, d_k=d_v=32
    B, H, L, D_K, D_V = 2, 4, 8, 32, 32

    key = jax.random.PRNGKey(0)
    kq, kk, kv = jax.random.split(key, 3)
    Q = jax.random.normal(kq, (B, H, L, D_K), dtype=jnp.float32)
    K = jax.random.normal(kk, (B, H, L, D_K), dtype=jnp.float32)
    V = jax.random.normal(kv, (B, H, L, D_V), dtype=jnp.float32)

    # 1) shared causal mask (True = masked), passed deduplicated as (1,1,L,L)
    causal = jnp.triu(jnp.ones((L, L), dtype=jnp.bool_), k=1)
    mask_shared = causal[None, None]
    ctx1, attn1 = scaled_dot_product_attention(Q, K, V, mask_shared, D_K)
    jax.block_until_ready((ctx1, attn1))
    ctx1_ref, attn1_ref = _reference(Q, K, V, jnp.broadcast_to(causal, (B, H, L, L)), D_K)
    assert jnp.allclose(ctx1, ctx1_ref, atol=1e-4, rtol=1e-4), "context mismatch (shared mask)"
    assert jnp.allclose(attn1, attn1_ref, atol=1e-4, rtol=1e-4), "attn mismatch (shared mask)"

    # 2) per-batch padding mask (not shared across batch) -> per-(B,H) bias path
    lens = jnp.array([5, 8], dtype=jnp.int32)                       # key lengths per batch
    pad = (jnp.arange(L)[None, :] >= lens[:, None])                 # (B, L), True = masked
    mask_pad = pad[:, None, None, :]                                # (B, 1, 1, L)
    ctx2, attn2 = scaled_dot_product_attention(Q, K, V, mask_pad, D_K)
    jax.block_until_ready((ctx2, attn2))
    ctx2_ref, attn2_ref = _reference(Q, K, V, jnp.broadcast_to(mask_pad, (B, H, L, L)), D_K)
    assert jnp.allclose(ctx2, ctx2_ref, atol=1e-4, rtol=1e-4), "context mismatch (padding mask)"
    assert jnp.allclose(attn2, attn2_ref, atol=1e-4, rtol=1e-4), "attn mismatch (padding mask)"

    print("KERNEL_OK")
</pallas_src>

<mosaic_0001>
module attributes {stable_mosaic.version = 11 : i64} {
  func.func @_sdpa_kernel(%arg0: i32, %arg1: i32, %arg2: memref<2x8x32xf32, #tpu.memory_space<vmem>>, %arg3: memref<2x8x32xf32, #tpu.memory_space<vmem>>, %arg4: memref<2x8x32xf32, #tpu.memory_space<vmem>>, %arg5: memref<1x8x8xf32, #tpu.memory_space<vmem>>, %arg6: memref<2x8x32xf32, #tpu.memory_space<vmem>>, %arg7: memref<2x8x8xf32, #tpu.memory_space<vmem>>) attributes {dimension_semantics = [#tpu.dimension_semantics<parallel>, #tpu.dimension_semantics<parallel>], iteration_bounds = array<i64: 4, 1>, scalar_prefetch = 0 : i64, scratch_operands = 0 : i64, tpu.core_type = #tpu.core_type<tc>, window_params = [{transform_indices = @transform_0, window_bounds = array<i64: 2, 8, 32>}, {transform_indices = @transform_1, window_bounds = array<i64: 2, 8, 32>}, {transform_indices = @transform_2, window_bounds = array<i64: 2, 8, 32>}, {transform_indices = @transform_3, window_bounds = array<i64: 1, 8, 8>}, {transform_indices = @transform_4, window_bounds = array<i64: 2, 8, 32>}, {transform_indices = @transform_5, window_bounds = array<i64: 2, 8, 8>}]} {
    %c0 = arith.constant 0 : index
    %c0_0 = arith.constant 0 : index
    %c0_1 = arith.constant 0 : index
    %0 = vector.load %arg2[%c0, %c0_0, %c0_1] : memref<2x8x32xf32, #tpu.memory_space<vmem>>, vector<2x8x32xf32>
    %c0_2 = arith.constant 0 : index
    %c0_3 = arith.constant 0 : index
    %c0_4 = arith.constant 0 : index
    %1 = vector.load %arg3[%c0_2, %c0_3, %c0_4] : memref<2x8x32xf32, #tpu.memory_space<vmem>>, vector<2x8x32xf32>
    %c0_5 = arith.constant 0 : index
    %c0_6 = arith.constant 0 : index
    %c0_7 = arith.constant 0 : index
    %2 = vector.load %arg4[%c0_5, %c0_6, %c0_7] : memref<2x8x32xf32, #tpu.memory_space<vmem>>, vector<2x8x32xf32>
    %c0_8 = arith.constant 0 : index
    %c0_9 = arith.constant 0 : index
    %c0_10 = arith.constant 0 : index
    %3 = vector.load %arg5[%c0_8, %c0_9, %c0_10] : memref<1x8x8xf32, #tpu.memory_space<vmem>>, vector<1x8x8xf32>
    "tpu.trace_start"() <{level = 10 : i32, message = "bqd,bkd->bqk"}> : () -> ()
    %cst = arith.constant dense<0.000000e+00> : vector<2x8x8xf32>
    %4 = tpu.matmul %0, %1, %cst {dimension_numbers = #tpu.dot_dimension_numbers<[2], [2], [1], [1], [0, 0, 0, 1, 1, 1], [0], [0]>} : vector<2x8x32xf32>, vector<2x8x32xf32>, vector<2x8x8xf32> -> vector<2x8x8xf32>
    "tpu.trace_stop"() : () -> ()
    %cst_11 = arith.constant 0.176776692 : f32
    %5 = vector.broadcast %cst_11 : f32 to vector<2x8x8xf32>
    %6 = arith.mulf %4, %5 : vector<2x8x8xf32>
    %7 = vector.broadcast %3 : vector<1x8x8xf32> to vector<2x8x8xf32>
    %8 = arith.addf %6, %7 : vector<2x8x8xf32>
    %cst_12 = arith.constant dense<0xFF800000> : vector<2x8xf32>
    %9 = vector.multi_reduction <maximumf>, %8, %cst_12 [2] : vector<2x8x8xf32> to vector<2x8xf32>
    %10 = vector.shape_cast %9 : vector<2x8xf32> to vector<2x8x1xf32>
    %11 = vector.broadcast %10 : vector<2x8x1xf32> to vector<2x8x8xf32>
    %12 = arith.subf %8, %11 : vector<2x8x8xf32>
    %13 = math.exp %12 : vector<2x8x8xf32>
    %cst_13 = arith.constant dense<0.000000e+00> : vector<2x8xf32>
    %14 = vector.multi_reduction <add>, %13, %cst_13 [2] : vector<2x8x8xf32> to vector<2x8xf32>
    %15 = vector.shape_cast %14 : vector<2x8xf32> to vector<2x8x1xf32>
    %16 = vector.broadcast %15 : vector<2x8x1xf32> to vector<2x8x8xf32>
    %17 = arith.divf %13, %16 : vector<2x8x8xf32>
    "tpu.trace_start"() <{level = 10 : i32, message = "bqk,bkd->bqd"}> : () -> ()
    %cst_14 = arith.constant dense<0.000000e+00> : vector<2x8x32xf32>
    %18 = tpu.matmul %17, %2, %cst_14 {dimension_numbers = #tpu.dot_dimension_numbers<[2], [1], [1], [2], [0, 0, 0, 1, 1, 2], [0], [0]>} : vector<2x8x8xf32>, vector<2x8x32xf32>, vector<2x8x32xf32> -> vector<2x8x32xf32>
    "tpu.trace_stop"() : () -> ()
    %c0_15 = arith.constant 0 : index
    %c0_16 = arith.constant 0 : index
    %c0_17 = arith.constant 0 : index
    %19 = vector.load %arg7[%c0_15, %c0_16, %c0_17] : memref<2x8x8xf32, #tpu.memory_space<vmem>>, vector<2x8x8xf32>
    tpu.vector_store %arg7[%c0_15, %c0_16, %c0_17], %17 {strides = array<i32>} : memref<2x8x8xf32, #tpu.memory_space<vmem>>, vector<2x8x8xf32>,
    %c0_18 = arith.constant 0 : index
    %c0_19 = arith.constant 0 : index
    %c0_20 = arith.constant 0 : index
    %20 = vector.load %arg6[%c0_18, %c0_19, %c0_20] : memref<2x8x32xf32, #tpu.memory_space<vmem>>, vector<2x8x32xf32>
    tpu.vector_store %arg6[%c0_18, %c0_19, %c0_20], %18 {strides = array<i32>} : memref<2x8x32xf32, #tpu.memory_space<vmem>>, vector<2x8x32xf32>,
    return
  }
  func.func @transform_0(%arg0: i32, %arg1: i32) -> (i32, i32, i32) {
    %c0_i32 = arith.constant 0 : i32
    %c0_i32_0 = arith.constant 0 : i32
    return %arg0, %arg1, %c0_i32 : i32, i32, i32
  }
  func.func @transform_1(%arg0: i32, %arg1: i32) -> (i32, i32, i32) {
    %c0_i32 = arith.constant 0 : i32
    %c0_i32_0 = arith.constant 0 : i32
    %c0_i32_1 = arith.constant 0 : i32
    return %arg0, %c0_i32, %c0_i32_0 : i32, i32, i32
  }
  func.func @transform_2(%arg0: i32, %arg1: i32) -> (i32, i32, i32) {
    %c0_i32 = arith.constant 0 : i32
    %c0_i32_0 = arith.constant 0 : i32
    %c0_i32_1 = arith.constant 0 : i32
    return %arg0, %c0_i32, %c0_i32_0 : i32, i32, i32
  }
  func.func @transform_3(%arg0: i32, %arg1: i32) -> (i32, i32, i32) {
    %c0_i32 = arith.constant 0 : i32
    %c0_i32_0 = arith.constant 0 : i32
    %c0_i32_1 = arith.constant 0 : i32
    return %c0_i32, %arg1, %c0_i32_0 : i32, i32, i32
  }
  func.func @transform_4(%arg0: i32, %arg1: i32) -> (i32, i32, i32) {
    %c0_i32 = arith.constant 0 : i32
    %c0_i32_0 = arith.constant 0 : i32
    return %arg0, %arg1, %c0_i32 : i32, i32, i32
  }
  func.func @transform_5(%arg0: i32, %arg1: i32) -> (i32, i32, i32) {
    %c0_i32 = arith.constant 0 : i32
    %c0_i32_0 = arith.constant 0 : i32
    return %arg0, %arg1, %c0_i32 : i32, i32, i32
  }
}

</mosaic_0001>

<llo_original>
// kernel: tpu_custom_call.1
$region0: #{tpu_custom_call.1}
  #allocation0 [shape = 'u32[]', space=smem, size = 0x4, offset = 0x4, fixed_abs, tag = 'smem constant byte address 0x4 - core index']
  #allocation1 [shape = 'u32[144,128]{1,0:T(1,128)}', space=vmem, size = 0x12000, scoped, tag = 'internal scratch']
  %s0 = inlined_call_operand.hbm [shape: f32[8,8,32], index: 0, kind: input, shape index: {}]
  %s1 = inlined_call_operand.hbm [shape: f32[8,8,32], index: 1, kind: input, shape index: {}]
  %s2 = inlined_call_operand.hbm [shape: f32[8,8,32], index: 2, kind: input, shape index: {}]
  %s3 = inlined_call_operand.hbm [shape: f32[1,8,8], index: 3, kind: input, shape index: {}]
  %s4 = inlined_call_operand.hbm [shape: f32[8,8,32], index: 4, kind: output, shape index: {0}]
  %s5 = inlined_call_operand.hbm [shape: f32[8,8,8], index: 5, kind: output, shape index: {1}]
  %6 = xla_tuple %s4, %s5
  %s7 = sld [smem:[#allocation0]]
  $region73: #{tpu_custom_call.1} parent=0
    _
  %s9 = ssub.s32 1, %s7
  %s10 = scalar_select 0, %s9, %s7
  $region1: #{tpu_custom_call.1} parent=0
    #allocation2 [shape = 'u8[16384]{0}', space=vmem, size = 0x4000, scoped, tag = 'input window, operand 0']
    #allocation3 [shape = 's32[2]{0}', space=sflag, size = 0x8, scoped, tag = 'scoped memory for tpu_custom_call.1']
    #allocation4 [shape = 's32[2]{0}', space=sflag, size = 0x8, scoped, tag = 'scoped memory for tpu_custom_call.1']
    #allocation5 [shape = 'u8[16384]{0}', space=vmem, size = 0x4000, scoped, tag = 'input window, operand 1']
    #allocation6 [shape = 's32[2]{0}', space=sflag, size = 0x8, scoped, tag = 'scoped memory for tpu_custom_call.1']
    #allocation7 [shape = 'u8[16384]{0}', space=vmem, size = 0x4000, scoped, tag = 'input window, operand 2']
    #allocation8 [shape = 'u8[4096]{0}', space=vmem, size = 0x1000, scoped, tag = 'input window, operand 3, single buffered']
    #allocation9 [shape = 's32[1]{0}', space=sflag, size = 0x4, scoped, tag = 'scoped memory for tpu_custom_call.1']
    #allocation10 [shape = 'u8[16384]{0}', space=vmem, size = 0x4000, scoped, tag = 'output window, operand 0']
    #allocation11 [shape = 'u8[16384]{0}', space=vmem, size = 0x4000, scoped, tag = 'output window, operand 1']
    #allocation12 [shape = 's32[2]{0}', space=sflag, size = 0x8, scoped, tag = 'scoped memory for tpu_custom_call.1']
    %11 = vsyncpa [#allocation3], 0
    %s12 = scalar_lea.sflag [#allocation3], 1
    %13 = vsyncpa %s12, 0
    %14 = vsyncpa [#allocation6], 0
    %s15 = scalar_lea.sflag [#allocation6], 1
    %16 = vsyncpa %s15, 0
    %17 = vsyncpa [#allocation9], 0
    %18 = vsyncpa [#allocation4], 0
    %s19 = scalar_lea.sflag [#allocation4], 1
    %20 = vsyncpa %s19, 0
    %21 = vsyncpa [#allocation12], 0
    %s22 = scalar_lea.sflag [#allocation12], 1
    %23 = vsyncpa %s22, 0
    loop: start=0, step=1, limit=6
    $region2: #{tpu_custom_call.1} parent=1 // loop_pre_header
      _
    $region3: #{tpu_custom_call.1} parent=1 // loop_header
      %s25 = sphi 0, %s29
      %p26 = scmp.ge.s32.totalorder %s25, 6
      %s32 = sphi 0, %s44
      %s33 = sphi 0, %s40
      %s34 = sphi 0, %s32
      %s35 = sphi 0, %s33
      %s36 = sphi 0, %s34
      %s37 = sphi 0, %s35
      %s49 = sphi 0, %s51
      %s52 = sphi 0, %s49
      %s53 = sphi 0, %s52
      %s69 = sphi 0, %s53
      %s75 = sphi 0, %s77
      %s78 = sphi 0, %s75
      %s79 = sphi 0, %s78
      %s95 = sphi 0, %s79
      %s101 = sphi 0, %s103
      %s104 = sphi 0, %s101
      %s105 = sphi 0, %s104
      %s121 = sphi 0, %s105
      %s127 = sphi 0, %s129
      %s130 = sphi 0, %s127
      %s131 = sphi 0, %s130
      %s147 = sphi 0, %s131
      %s155 = sphi 0, %s157
      %s158 = sphi 0, %s155
      %s159 = sphi 0, %s158
      %s175 = sphi 0, %s159
      %s183 = sphi 0, %s185
      %s186 = sphi 0, %s183
      %s187 = sphi 0, %s186
      %s203 = sphi 0, %s187
    $region4: #{tpu_custom_call.1} parent=1 // loop_header_branch
      %28 = sbr.rel (%p26) target = $region8
    $region5: #{tpu_custom_call.1} parent=1 // loop_body
      %s30 = ssub.s32 %s25, 1
      %s31 = ssub.s32 %s25, 2
      %s38 = sadd.s32 1, %s33
      %p39 = scmp.ge.s32.totalorder %s38, 1
      %s40 = scalar_select %p39, 0, %s38
      %s41 = sadd.s32 1, %s32
      %s42 = scalar_select %p39, %s41, %s32
      %p43 = scmp.ge.s32.totalorder %s42, 4
      %s44 = scalar_select %p43, 0, %s42
      %s45 = ssub.s32 %s32, %s44
      %s46 = ssub.s32 %s33, %s40
      %s47 = sor.u32 %s45, %s46
      %p48 = scmp.eq.s32.totalorder %s47, 0
      %s50 = sadd.s32 %s49, 1
      %s51 = scalar_select %p48, %s49, %s50
      %p54 = pneg %p48
      %p55 = scmp.eq.s32.totalorder %s25, 3
      %p56 = por %p54, %p55
      %p57 = scmp.ne.s32.totalorder %s49, %s52
      %p58 = scmp.eq.s32.totalorder %s25, 0
      %p59 = por %p57, %p58
      %p60 = scmp.ne.s32.totalorder %s49, %s52
      %p61 = scmp.eq.s32.totalorder %s30, 3
      %p62 = por %p60, %p61
      %p63 = scmp.ne.s32.totalorder %s52, %s53
      %p64 = scmp.eq.s32.totalorder %s30, 0
      %p65 = por %p63, %p64
      %p66 = scmp.ne.s32.totalorder %s52, %s53
      %p67 = scmp.eq.s32.totalorder %s31, 3
      %p68 = por %p66, %p67
      %p70 = scmp.ne.s32.totalorder %s53, %s69
      %p71 = scmp.eq.s32.totalorder %s31, 0
      %p72 = por %p70, %p71
      %s73 = ssub.s32 %s32, %s44
      %p74 = scmp.eq.s32.totalorder %s73, 0
      %s76 = sadd.s32 %s75, 1
      %s77 = scalar_select %p74, %s75, %s76
      %p80 = pneg %p74
      %p81 = scmp.eq.s32.totalorder %s25, 3
      %p82 = por %p80, %p81
      %p83 = scmp.ne.s32.totalorder %s75, %s78
      %p84 = scmp.eq.s32.totalorder %s25, 0
      %p85 = por %p83, %p84
      %p86 = scmp.ne.s32.totalorder %s75, %s78
      %p87 = scmp.eq.s32.totalorder %s30, 3
      %p88 = por %p86, %p87
      %p89 = scmp.ne.s32.totalorder %s78, %s79
      %p90 = scmp.eq.s32.totalorder %s30, 0
      %p91 = por %p89, %p90
      %p92 = scmp.ne.s32.totalorder %s78, %s79
      %p93 = scmp.eq.s32.totalorder %s31, 3
      %p94 = por %p92, %p93
      %p96 = scmp.ne.s32.totalorder %s79, %s95
      %p97 = scmp.eq.s32.totalorder %s31, 0
      %p98 = por %p96, %p97
      %s99 = ssub.s32 %s32, %s44
      %p100 = scmp.eq.s32.totalorder %s99, 0
      %s102 = sadd.s32 %s101, 1
      %s103 = scalar_select %p100, %s101, %s102
      %p106 = pneg %p100
      %p107 = scmp.eq.s32.totalorder %s25, 3
      %p108 = por %p106, %p107
      %p109 = scmp.ne.s32.totalorder %s101, %s104
      %p110 = scmp.eq.s32.totalorder %s25, 0
      %p111 = por %p109, %p110
      %p112 = scmp.ne.s32.totalorder %s101, %s104
      %p113 = scmp.eq.s32.totalorder %s30, 3
      %p114 = por %p112, %p113
      %p115 = scmp.ne.s32.totalorder %s104, %s105
      %p116 = scmp.eq.s32.totalorder %s30, 0
      %p117 = por %p115, %p116
      %p118 = scmp.ne.s32.totalorder %s104, %s105
      %p119 = scmp.eq.s32.totalorder %s31, 3
      %p120 = por %p118, %p119
      %p122 = scmp.ne.s32.totalorder %s105, %s121
      %p123 = scmp.eq.s32.totalorder %s31, 0
      %p124 = por %p122, %p123
      %s125 = ssub.s32 %s33, %s40
      %p126 = scmp.eq.s32.totalorder %s125, 0
      %s128 = sadd.s32 %s127, 1
      %s129 = scalar_select %p126, %s127, %s128
      %p132 = pneg %p126
      %p133 = scmp.eq.s32.totalorder %s25, 3
      %p134 = por %p132, %p133
      %p135 = scmp.ne.s32.totalorder %s127, %s130
      %p136 = scmp.eq.s32.totalorder %s25, 0
      %p137 = por %p135, %p136
      %p138 = scmp.ne.s32.totalorder %s127, %s130
      %p139 = scmp.eq.s32.totalorder %s30, 3
      %p140 = por %p138, %p139
      %p141 = scmp.ne.s32.totalorder %s130, %s131
      %p142 = scmp.eq.s32.totalorder %s30, 0
      %p143 = por %p141, %p142
      %p144 = scmp.ne.s32.totalorder %s130, %s131
      %p145 = scmp.eq.s32.totalorder %s31, 3
      %p146 = por %p144, %p145
      %p148 = scmp.ne.s32.totalorder %s131, %s147
      %p149 = scmp.eq.s32.totalorder %s31, 0
      %p150 = por %p148, %p149
      %s151 = ssub.s32 %s32, %s44
      %s152 = ssub.s32 %s33, %s40
      %s153 = sor.u32 %s151, %s152
      %p154 = scmp.eq.s32.totalorder %s153, 0
      %s156 = sadd.s32 %s155, 1
      %s157 = scalar_select %p154, %s155, %s156
      %p160 = pneg %p154
      %p161 = scmp.eq.s32.totalorder %s25, 3
      %p162 = por %p160, %p161
      %p163 = scmp.ne.s32.totalorder %s155, %s158
      %p164 = scmp.eq.s32.totalorder %s25, 0
      %p165 = por %p163, %p164
      %p166 = scmp.ne.s32.totalorder %s155, %s158
      %p167 = scmp.eq.s32.totalorder %s30, 3
      %p168 = por %p166, %p167
      %p169 = scmp.ne.s32.totalorder %s158, %s159
      %p170 = scmp.eq.s32.totalorder %s30, 0
      %p171 = por %p169, %p170
      %p172 = scmp.ne.s32.totalorder %s158, %s159
      %p173 = scmp.eq.s32.totalorder %s31, 3
      %p174 = por %p172, %p173
      %p176 = scmp.ne.s32.totalorder %s159, %s175
      %p177 = scmp.eq.s32.totalorder %s31, 0
      %p178 = por %p176, %p177
      %s179 = ssub.s32 %s32, %s44
      %s180 = ssub.s32 %s33, %s40
      %s181 = sor.u32 %s179, %s180
      %p182 = scmp.eq.s32.totalorder %s181, 0
      %s184 = sadd.s32 %s183, 1
      %s185 = scalar_select %p182, %s183, %s184
      %p188 = pneg %p182
      %p189 = scmp.eq.s32.totalorder %s25, 3
      %p190 = por %p188, %p189
      %p191 = scmp.ne.s32.totalorder %s183, %s186
      %p192 = scmp.eq.s32.totalorder %s25, 0
      %p193 = por %p191, %p192
      %p194 = scmp.ne.s32.totalorder %s183, %s186
      %p195 = scmp.eq.s32.totalorder %s30, 3
      %p196 = por %p194, %p195
      %p197 = scmp.ne.s32.totalorder %s186, %s187
      %p198 = scmp.eq.s32.totalorder %s30, 0
      %p199 = por %p197, %p198
      %p200 = scmp.ne.s32.totalorder %s186, %s187
      %p201 = scmp.eq.s32.totalorder %s31, 3
      %p202 = por %p200, %p201
      %p204 = scmp.ne.s32.totalorder %s187, %s203
      %p205 = scmp.eq.s32.totalorder %s31, 0
      %p206 = por %p204, %p205
      %p207 = scmp.le.s32.totalorder 1, %s25
      %p208 = scmp.lt.s32.totalorder %s25, 5
      %p209 = pnand %p207, %p208
      %p210 = pneg %p209
      // Predicated region
      $region9: #{tpu_custom_call.1} parent=5 // pred_check
        _
      $region10: #{tpu_custom_call.1} parent=5 // pred_check_branch
        %212 = sbr.rel (%p209) target = $region12
      $region11: #{tpu_custom_call.1} parent=5 // pred_region
        %s213 = ssub.s32 %s25, 1
        // Predicated region
        $region13: #{tpu_custom_call.1} parent=11 // pred_check
          %p214 = pneg %p143
        $region14: #{tpu_custom_call.1} parent=11 // pred_check_branch
          %216 = sbr.rel (%p214) target = $region16
        $region15: #{tpu_custom_call.1} parent=11 // pred_region
          %s218 = ssub.s32 128, 128
          %219 = vsyncadd [#allocation9], %s218
          %s220 = smul.addr %s35, 128
          %s221 = scalar_lea.hbm %s3, %s220
          %s223 = sshll.u32 [#allocation8], 4
          %s224 = int_to_ptr.vmem [resolvable:$true] %s223
          %226 = dma.hbm_to_vmem [thread:$0]  %s221, 128, %s224, [#allocation9]
        $region16: #{tpu_custom_call.1} parent=11 // pred_fallthru
          _
      $region12: #{tpu_custom_call.1} parent=5 // pred_fallthru
        _
      %p227 = scmp.lt.s32.totalorder %s25, 4
      // Predicated region
      $region17: #{tpu_custom_call.1} parent=5 // pred_check
        %p228 = pneg %p227
      $region18: #{tpu_custom_call.1} parent=5 // pred_check_branch
        %230 = sbr.rel (%p228) target = $region20
      $region19: #{tpu_custom_call.1} parent=5 // pred_region
        // Predicated region
        $region21: #{tpu_custom_call.1} parent=19 // pred_check
          %p231 = pneg %p59
        $region22: #{tpu_custom_call.1} parent=19 // pred_check_branch
          %233 = sbr.rel (%p231) target = $region24
        $region23: #{tpu_custom_call.1} parent=19 // pred_region
          %s234 = sand.u32 %s49, 1
          %s235 = scalar_lea.sflag [#allocation3], %s234
          %s236 = sand.u32 %s49, 1
          %s237 = smul.addr %s236, 16
          %s238 = scalar_lea.vmem [#allocation2], %s237
          %s239 = smul.u32 2, %s32
          %s241 = ssub.s32 256, 256
          %242 = vsyncadd %s235, %s241
          %s243 = sadd.s32 %s33, %s239
          %s244 = smul.addr %s243, 128
          %s245 = scalar_lea.hbm %s0, %s244
          %s246 = sshll.u32 %s238, 4
          %s247 = int_to_ptr.vmem [resolvable:$true] %s246
          %252 = dma.hbm_to_vmem [thread:$0]  %s245, 256, %s247, %s235, 128, 128, 8
        $region24: #{tpu_custom_call.1} parent=19 // pred_fallthru
          _
        // Predicated region
        $region25: #{tpu_custom_call.1} parent=19 // pred_check
          %p253 = pneg %p85
        $region26: #{tpu_custom_call.1} parent=19 // pred_check_branch
          %255 = sbr.rel (%p253) target = $region28
        $region27: #{tpu_custom_call.1} parent=19 // pred_region
          %s256 = sand.u32 %s25, 1
          %s257 = scalar_lea.sflag [#allocation6], %s256
          %s258 = sand.u32 %s75, 1
          %s259 = smul.addr %s258, 16
          %s260 = scalar_lea.vmem [#allocation5], %s259
          %s261 = smul.u32 2, %s32
          %s263 = ssub.s32 256, 256
          %264 = vsyncadd %s257, %s263
          %s265 = smul.addr %s261, 128
          %s266 = scalar_lea.hbm %s1, %s265
          %s267 = sshll.u32 %s260, 4
          %s268 = int_to_ptr.vmem [resolvable:$true] %s267
          %273 = dma.hbm_to_vmem [thread:$0]  %s266, 256, %s268, %s257, 128, 128, 8
        $region28: #{tpu_custom_call.1} parent=19 // pred_fallthru
          _
        // Predicated region
        $region29: #{tpu_custom_call.1} parent=19 // pred_check
          %p274 = pneg %p111
        $region30: #{tpu_custom_call.1} parent=19 // pred_check_branch
          %276 = sbr.rel (%p274) target = $region32
        $region31: #{tpu_custom_call.1} parent=19 // pred_region
          %s277 = sand.u32 %s25, 1
          %s278 = scalar_lea.sflag [#allocation6], %s277
          %s279 = sand.u32 %s101, 1
          %s280 = smul.addr %s279, 16
          %s281 = scalar_lea.vmem [#allocation7], %s280
          %s282 = smul.u32 2, %s32
          %s284 = ssub.s32 256, 256
          %285 = vsyncadd %s278, %s284
          %s286 = smul.addr %s282, 128
          %s287 = scalar_lea.hbm %s2, %s286
          %s288 = sshll.u32 %s281, 4
          %s289 = int_to_ptr.vmem [resolvable:$true] %s288
          %294 = dma.hbm_to_vmem [thread:$0]  %s287, 256, %s289, %s278, 128, 128, 8
        $region32: #{tpu_custom_call.1} parent=19 // pred_fallthru
          _
      $region20: #{tpu_custom_call.1} parent=5 // pred_fallthru
        _
      %p295 = scmp.le.s32.totalorder 1, %s25
      %p296 = scmp.lt.s32.totalorder %s25, 5
      %p297 = pnand %p295, %p296
      %p298 = pneg %p297
      // Predicated region
      $region33: #{tpu_custom_call.1} parent=5 // pred_check
        _
      $region34: #{tpu_custom_call.1} parent=5 // pred_check_branch
        %300 = sbr.rel (%p297) target = $region36
      $region35: #{tpu_custom_call.1} parent=5 // pred_region
        %s301 = ssub.s32 %s25, 1
        %s302 = sand.u32 %s52, 1
        %s303 = scalar_lea.sflag [#allocation3], %s302
        %s304 = sand.u32 %s52, 1
        %s305 = smul.addr %s304, 16
        %s306 = scalar_lea.vmem [#allocation2], %s305
        // Predicated region
        $region37: #{tpu_custom_call.1} parent=35 // pred_check
          %p307 = pneg %p65
        $region38: #{tpu_custom_call.1} parent=35 // pred_check_branch
          %309 = sbr.rel (%p307) target = $region40
        $region39: #{tpu_custom_call.1} parent=35 // pred_region
          %310 = dma.done %s303, 256
        $region40: #{tpu_custom_call.1} parent=35 // pred_fallthru
          _
        %s311 = sand.u32 %s30, 1
        %s312 = scalar_lea.sflag [#allocation6], %s311
        %s313 = sand.u32 %s78, 1
        %s314 = smul.addr %s313, 16
        %s315 = scalar_lea.vmem [#allocation5], %s314
        // Predicated region
        $region41: #{tpu_custom_call.1} parent=35 // pred_check
          %p316 = pneg %p91
        $region42: #{tpu_custom_call.1} parent=35 // pred_check_branch
          %318 = sbr.rel (%p316) target = $region44
        $region43: #{tpu_custom_call.1} parent=35 // pred_region
          %319 = dma.done %s312, 256
        $region44: #{tpu_custom_call.1} parent=35 // pred_fallthru
          _
        %s320 = sand.u32 %s30, 1
        %s321 = scalar_lea.sflag [#allocation6], %s320
        %s322 = sand.u32 %s104, 1
        %s323 = smul.addr %s322, 16
        %s324 = scalar_lea.vmem [#allocation7], %s323
        // Predicated region
        $region45: #{tpu_custom_call.1} parent=35 // pred_check
          %p325 = pneg %p117
        $region46: #{tpu_custom_call.1} parent=35 // pred_check_branch
          %327 = sbr.rel (%p325) target = $region48
        $region47: #{tpu_custom_call.1} parent=35 // pred_region
          %328 = dma.done %s321, 256
        $region48: #{tpu_custom_call.1} parent=35 // pred_fallthru
          _
        // Predicated region
        $region49: #{tpu_custom_call.1} parent=35 // pred_check
          %p329 = pneg %p143
        $region50: #{tpu_custom_call.1} parent=35 // pred_check_branch
          %331 = sbr.rel (%p329) target = $region52
        $region51: #{tpu_custom_call.1} parent=35 // pred_region
          %332 = dma.done [#allocation9], 128
        $region52: #{tpu_custom_call.1} parent=35 // pred_fallthru
          _
        %s333 = sand.u32 %s52, 1
        %s334 = scalar_lea.sflag [#allocation3], %s333
        %s335 = sand.u32 %s52, 1
        %s336 = smul.addr %s335, 16
        %s337 = scalar_lea.vmem [#allocation2], %s336
        %p338 = pneg %p65
        %p339 = pneg %p62
        %s340 = sand.u32 %s30, 1
        %s341 = scalar_lea.sflag [#allocation6], %s340
        %s342 = sand.u32 %s78, 1
        %s343 = smul.addr %s342, 16
        %s344 = scalar_lea.vmem [#allocation5], %s343
        %p345 = pneg %p91
        %p346 = pneg %p88
        %s347 = sand.u32 %s30, 1
        %s348 = scalar_lea.sflag [#allocation6], %s347
        %s349 = sand.u32 %s104, 1
        %s350 = smul.addr %s349, 16
        %s351 = scalar_lea.vmem [#allocation7], %s350
        %p352 = pneg %p117
        %p353 = pneg %p114
        %p354 = pneg %p143
        %p355 = pneg %p140
        %p356 = pneg %p171
        %p357 = pneg %p168
        %s358 = sand.u32 %s158, 1
        %s359 = scalar_lea.sflag [#allocation4], %s358
        %s360 = sand.u32 %s158, 1
        %s361 = smul.addr %s360, 16
        %s362 = scalar_lea.vmem [#allocation10], %s361
        %p363 = pneg %p199
        %p364 = pneg %p196
        %s365 = sand.u32 %s186, 1
        %s366 = scalar_lea.sflag [#allocation12], %s365
        %s367 = sand.u32 %s186, 1
        %s368 = smul.addr %s367, 16
        %s369 = scalar_lea.vmem [#allocation11], %s368
        %s370 = smul.u32 2, %s34
        %s371 = smul.u32 2, %s34
        %s372 = smul.u32 2, %s34
        %s373 = smul.u32 2, %s34
        %s374 = smul.u32 2, %s34
        %v375 = vld [vmem:[%s306] sm:$0xff]
        %v376 = vld [vmem:[%s306 + $0x8] sm:$0xff]
        %v377 = vld [vmem:[%s315] sm:$0xff]
        %v378 = vld [vmem:[%s315 + $0x8] sm:$0xff]
        %v379 = vld [vmem:[%s324] sm:$0xff]
        %v380 = vld [vmem:[%s324 + $0x8] sm:$0xff]
        %v381 = vld [vmem:[#allocation8] sm:$0xff]
        %vm382 = vcmask 261120
        %v384 = vsel %vm382, %v375, 0
        %v387 = vsel %vm382, %v377, 0
        %389 = vmatprep.subr.mxu0 0.0
        %390 = vmatpush1.xpose.msra.mxu0 %v387
        %391 = vmatprep.subr.mxu0 0.0
        %392 = vmatpush1.xpose.msra.mxu0 0.0
        %393 = vmatprep.subr.mxu0 0.0
        %394 = vmatpush1.xpose.msra.mxu0 0.0
        %395 = vmatprep.subr.mxu0 0.0
        %396 = vmatpush1.xpose.msra.mxu0 0.0
        %397 = vmatprep.subr.mxu0 0.0
        %398 = vmatpush1.xpose.msra.mxu0 0.0
        %399 = vmatprep.subr.mxu0 0.0
        %400 = vmatpush1.xpose.msra.mxu0 0.0
        %401 = vmatprep.subr.mxu0 0.0
        %402 = vmatpush1.xpose.msra.mxu0 0.0
        %403 = vmatprep.subr.mxu0 0.0
        %404 = vmatpush1.xpose.msra.mxu0 0.0
        %405 = vmatprep.subr.mxu0 0.0
        %406 = vmatpush1.xpose.msra.mxu0 0.0
        %407 = vmatprep.subr.mxu0 0.0
        %408 = vmatpush1.xpose.msra.mxu0 0.0
        %409 = vmatprep.subr.mxu0 0.0
        %410 = vmatpush1.xpose.msra.mxu0 0.0
        %411 = vmatprep.subr.mxu0 0.0
        %412 = vmatpush1.xpose.msra.mxu0 0.0
        %413 = vmatprep.subr.mxu0 0.0
        %414 = vmatpush1.xpose.msra.mxu0 0.0
        %415 = vmatprep.subr.mxu0 0.0
        %416 = vmatpush1.xpose.msra.mxu0 0.0
        %417 = vmatprep.subr.mxu0 0.0
        %418 = vmatpush1.xpose.msra.mxu0 0.0
        %419 = vmatprep.subr.mxu0 0.0
        %420 = vmatpush1.xpose.msra.mxu0 0.0
        %421 = vmatprep.subr.mxu0 0.0
        %422 = vmatpush1.xpose.msra.mxu0 0.0
        %423 = vmatprep.subr.mxu0 0.0
        %424 = vmatpush1.xpose.msra.mxu0 0.0
        %425 = vmatprep.subr.mxu0 0.0
        %426 = vmatpush1.xpose.msra.mxu0 0.0
        %427 = vmatprep.subr.mxu0 0.0
        %428 = vmatpush1.xpose.msra.mxu0 0.0
        %429 = vmatprep.subr.mxu0 0.0
        %430 = vmatpush1.xpose.msra.mxu0 0.0
        %431 = vmatprep.subr.mxu0 0.0
        %432 = vmatpush1.xpose.msra.mxu0 0.0
        %433 = vmatprep.subr.mxu0 0.0
        %434 = vmatpush1.xpose.msra.mxu0 0.0
        %435 = vmatprep.subr.mxu0 0.0
        %436 = vmatpush1.xpose.msra.mxu0 0.0
        %437 = vmatprep.subr.mxu0 0.0
        %438 = vmatpush1.xpose.msra.mxu0 0.0
        %439 = vmatprep.subr.mxu0 0.0
        %440 = vmatpush1.xpose.msra.mxu0 0.0
        %441 = vmatprep.subr.mxu0 0.0
        %442 = vmatpush1.xpose.msra.mxu0 0.0
        %443 = vmatprep.subr.mxu0 0.0
        %444 = vmatpush1.xpose.msra.mxu0 0.0
        %445 = vmatprep.subr.mxu0 0.0
        %446 = vmatpush1.xpose.msra.mxu0 0.0
        %447 = vmatprep.subr.mxu0 0.0
        %448 = vmatpush1.xpose.msra.mxu0 0.0
        %449 = vmatprep.subr.mxu0 0.0
        %450 = vmatpush1.xpose.msra.mxu0 0.0
        %451 = vmatprep.subr.mxu0 0.0
        %452 = vmatpush1.xpose.msra.mxu0 0.0
        %453 = vmatprep.mubr.f32.mxu0 0.0
        %454 = vmatmul.mubr.f32.gmra.mrb[0].mxu0 %v384
        %v455 = vpop.f32.mrb[0].mxu0
        %v456 = vadd.f32 0.0, %v455
        %v457 = vpop.f32.mrb[0].mxu0
        %458 = vdwg.mxu0
        %v460 = vsel %vm382, %v376, 0
        %v463 = vsel %vm382, %v378, 0
        %465 = vmatprep.subr.mxu0 0.0
        %466 = vmatpush1.xpose.msra.mxu0 %v463
        %467 = vmatprep.subr.mxu0 0.0
        %468 = vmatpush1.xpose.msra.mxu0 0.0
        %469 = vmatprep.subr.mxu0 0.0
        %470 = vmatpush1.xpose.msra.mxu0 0.0
        %471 = vmatprep.subr.mxu0 0.0
        %472 = vmatpush1.xpose.msra.mxu0 0.0
        %473 = vmatprep.subr.mxu0 0.0
        %474 = vmatpush1.xpose.msra.mxu0 0.0
        %475 = vmatprep.subr.mxu0 0.0
        %476 = vmatpush1.xpose.msra.mxu0 0.0
        %477 = vmatprep.subr.mxu0 0.0
        %478 = vmatpush1.xpose.msra.mxu0 0.0
        %479 = vmatprep.subr.mxu0 0.0
        %480 = vmatpush1.xpose.msra.mxu0 0.0
        %481 = vmatprep.subr.mxu0 0.0
        %482 = vmatpush1.xpose.msra.mxu0 0.0
        %483 = vmatprep.subr.mxu0 0.0
        %484 = vmatpush1.xpose.msra.mxu0 0.0
        %485 = vmatprep.subr.mxu0 0.0
        %486 = vmatpush1.xpose.msra.mxu0 0.0
        %487 = vmatprep.subr.mxu0 0.0
        %488 = vmatpush1.xpose.msra.mxu0 0.0
        %489 = vmatprep.subr.mxu0 0.0
        %490 = vmatpush1.xpose.msra.mxu0 0.0
        %491 = vmatprep.subr.mxu0 0.0
        %492 = vmatpush1.xpose.msra.mxu0 0.0
        %493 = vmatprep.subr.mxu0 0.0
        %494 = vmatpush1.xpose.msra.mxu0 0.0
        %495 = vmatprep.subr.mxu0 0.0
        %496 = vmatpush1.xpose.msra.mxu0 0.0
        %497 = vmatprep.subr.mxu0 0.0
        %498 = vmatpush1.xpose.msra.mxu0 0.0
        %499 = vmatprep.subr.mxu0 0.0
        %500 = vmatpush1.xpose.msra.mxu0 0.0
        %501 = vmatprep.subr.mxu0 0.0
        %502 = vmatpush1.xpose.msra.mxu0 0.0
        %503 = vmatprep.subr.mxu0 0.0
        %504 = vmatpush1.xpose.msra.mxu0 0.0
        %505 = vmatprep.subr.mxu0 0.0
        %506 = vmatpush1.xpose.msra.mxu0 0.0
        %507 = vmatprep.subr.mxu0 0.0
        %508 = vmatpush1.xpose.msra.mxu0 0.0
        %509 = vmatprep.subr.mxu0 0.0
        %510 = vmatpush1.xpose.msra.mxu0 0.0
        %511 = vmatprep.subr.mxu0 0.0
        %512 = vmatpush1.xpose.msra.mxu0 0.0
        %513 = vmatprep.subr.mxu0 0.0
        %514 = vmatpush1.xpose.msra.mxu0 0.0
        %515 = vmatprep.subr.mxu0 0.0
        %516 = vmatpush1.xpose.msra.mxu0 0.0
        %517 = vmatprep.subr.mxu0 0.0
        %518 = vmatpush1.xpose.msra.mxu0 0.0
        %519 = vmatprep.subr.mxu0 0.0
        %520 = vmatpush1.xpose.msra.mxu0 0.0
        %521 = vmatprep.subr.mxu0 0.0
        %522 = vmatpush1.xpose.msra.mxu0 0.0
        %523 = vmatprep.subr.mxu0 0.0
        %524 = vmatpush1.xpose.msra.mxu0 0.0
        %525 = vmatprep.subr.mxu0 0.0
        %526 = vmatpush1.xpose.msra.mxu0 0.0
        %527 = vmatprep.subr.mxu0 0.0
        %528 = vmatpush1.xpose.msra.mxu0 0.0
        %529 = vmatprep.mubr.f32.mxu0 0.0
        %530 = vmatmul.mubr.f32.gmra.mrb[0].mxu0 %v460
        %v531 = vpop.f32.mrb[0].mxu0
        %v532 = vadd.f32 0.0, %v531
        %v533 = vpop.f32.mrb[0].mxu0
        %534 = vdwg.mxu0
        %v535 = vmul.f32 %v456, 0.17677669
        %v536 = vmul.f32 %v532, 0.17677669
        %v537 = vadd.f32 %v535, %v381
        %v538 = vadd.f32 %v536, %v381
        %vm539 = vcmask 64512
        %v540 = vsel %vm539, %v537, -inf
        %541 = vmax.xlane.f32.xlu0 %v540
        %v542 = vpop.xlane.xlu0 %541
        %v543 = vsel %vm539, %v538, -inf
        %544 = vmax.xlane.f32.xlu0 %v543
        %v545 = vpop.xlane.xlu0 %544
        %v546 = vsub.f32 %v537, %v542
        %v547 = vsub.f32 %v538, %v545
        %v548 = vmul.f32 %v546, 1.442695
        %v549 = vpow.pop %v548
        %v550 = vmul.f32 %v547, 1.442695
        %v551 = vpow.pop %v550
        %v552 = vsel %vm539, %v549, 0.0
        %553 = vadd.xlane.f32.xlu0 %v552
        %v554 = vpop.xlane.xlu0 %553
        %v555 = vsel %vm539, %v551, 0.0
        %556 = vadd.xlane.f32.xlu0 %v555
        %v557 = vpop.xlane.xlu0 %556
        %v558 = vrcp.pop %v554
        %v559 = vmul.f32 %v549, %v558
        %v560 = vrcp.pop %v557
        %v561 = vmul.f32 %v551, %v560
        %v563 = vsel %vm539, %v559, 0
        %565 = vmatprep.subr.mxu0 0.0
        %566 = vmatpush1.msra.mxu0 %v379
        %567 = vmatprep.subr.mxu0 0.0
        %568 = vmatpush1.msra.mxu0 0.0
        %569 = vmatprep.subr.mxu0 0.0
        %570 = vmatpush1.msra.mxu0 0.0
        %571 = vmatprep.subr.mxu0 0.0
        %572 = vmatpush1.msra.mxu0 0.0
        %573 = vmatprep.subr.mxu0 0.0
        %574 = vmatpush1.msra.mxu0 0.0
        %575 = vmatprep.subr.mxu0 0.0
        %576 = vmatpush1.msra.mxu0 0.0
        %577 = vmatprep.subr.mxu0 0.0
        %578 = vmatpush1.msra.mxu0 0.0
        %579 = vmatprep.subr.mxu0 0.0
        %580 = vmatpush1.msra.mxu0 0.0
        %581 = vmatprep.subr.mxu0 0.0
        %582 = vmatpush1.msra.mxu0 0.0
        %583 = vmatprep.subr.mxu0 0.0
        %584 = vmatpush1.msra.mxu0 0.0
        %585 = vmatprep.subr.mxu0 0.0
        %586 = vmatpush1.msra.mxu0 0.0
        %587 = vmatprep.subr.mxu0 0.0
        %588 = vmatpush1.msra.mxu0 0.0
        %589 = vmatprep.subr.mxu0 0.0
        %590 = vmatpush1.msra.mxu0 0.0
        %591 = vmatprep.subr.mxu0 0.0
        %592 = vmatpush1.msra.mxu0 0.0
        %593 = vmatprep.subr.mxu0 0.0
        %594 = vmatpush1.msra.mxu0 0.0
        %595 = vmatprep.subr.mxu0 0.0
        %596 = vmatpush1.msra.mxu0 0.0
        %597 = vmatprep.subr.mxu0 0.0
        %598 = vmatpush1.msra.mxu0 0.0
        %599 = vmatprep.subr.mxu0 0.0
        %600 = vmatpush1.msra.mxu0 0.0
        %601 = vmatprep.subr.mxu0 0.0
        %602 = vmatpush1.msra.mxu0 0.0
        %603 = vmatprep.subr.mxu0 0.0
        %604 = vmatpush1.msra.mxu0 0.0
        %605 = vmatprep.subr.mxu0 0.0
        %606 = vmatpush1.msra.mxu0 0.0
        %607 = vmatprep.subr.mxu0 0.0
        %608 = vmatpush1.msra.mxu0 0.0
        %609 = vmatprep.subr.mxu0 0.0
        %610 = vmatpush1.msra.mxu0 0.0
        %611 = vmatprep.subr.mxu0 0.0
        %612 = vmatpush1.msra.mxu0 0.0
        %613 = vmatprep.subr.mxu0 0.0
        %614 = vmatpush1.msra.mxu0 0.0
        %615 = vmatprep.subr.mxu0 0.0
        %616 = vmatpush1.msra.mxu0 0.0
        %617 = vmatprep.subr.mxu0 0.0
        %618 = vmatpush1.msra.mxu0 0.0
        %619 = vmatprep.subr.mxu0 0.0
        %620 = vmatpush1.msra.mxu0 0.0
        %621 = vmatprep.subr.mxu0 0.0
        %622 = vmatpush1.msra.mxu0 0.0
        %623 = vmatprep.subr.mxu0 0.0
        %624 = vmatpush1.msra.mxu0 0.0
        %625 = vmatprep.subr.mxu0 0.0
        %626 = vmatpush1.msra.mxu0 0.0
        %627 = vmatprep.subr.mxu0 0.0
        %628 = vmatpush1.msra.mxu0 0.0
        %629 = vmatprep.mubr.f32.mxu0 0.0
        %630 = vmatmul.mubr.f32.gmra.mrb[0].mxu0 %v563
        %v631 = vpop.f32.mrb[0].mxu0
        %v632 = vadd.f32 0.0, %v631
        %v633 = vpop.f32.mrb[0].mxu0
        %634 = vdwg.mxu0
        %v636 = vsel %vm539, %v561, 0
        %638 = vmatprep.subr.mxu0 0.0
        %639 = vmatpush1.msra.mxu0 %v380
        %640 = vmatprep.subr.mxu0 0.0
        %641 = vmatpush1.msra.mxu0 0.0
        %642 = vmatprep.subr.mxu0 0.0
        %643 = vmatpush1.msra.mxu0 0.0
        %644 = vmatprep.subr.mxu0 0.0
        %645 = vmatpush1.msra.mxu0 0.0
        %646 = vmatprep.subr.mxu0 0.0
        %647 = vmatpush1.msra.mxu0 0.0
        %648 = vmatprep.subr.mxu0 0.0
        %649 = vmatpush1.msra.mxu0 0.0
        %650 = vmatprep.subr.mxu0 0.0
        %651 = vmatpush1.msra.mxu0 0.0
        %652 = vmatprep.subr.mxu0 0.0
        %653 = vmatpush1.msra.mxu0 0.0
        %654 = vmatprep.subr.mxu0 0.0
        %655 = vmatpush1.msra.mxu0 0.0
        %656 = vmatprep.subr.mxu0 0.0
        %657 = vmatpush1.msra.mxu0 0.0
        %658 = vmatprep.subr.mxu0 0.0
        %659 = vmatpush1.msra.mxu0 0.0
        %660 = vmatprep.subr.mxu0 0.0
        %661 = vmatpush1.msra.mxu0 0.0
        %662 = vmatprep.subr.mxu0 0.0
        %663 = vmatpush1.msra.mxu0 0.0
        %664 = vmatprep.subr.mxu0 0.0
        %665 = vmatpush1.msra.mxu0 0.0
        %666 = vmatprep.subr.mxu0 0.0
        %667 = vmatpush1.msra.mxu0 0.0
        %668 = vmatprep.subr.mxu0 0.0
        %669 = vmatpush1.msra.mxu0 0.0
        %670 = vmatprep.subr.mxu0 0.0
        %671 = vmatpush1.msra.mxu0 0.0
        %672 = vmatprep.subr.mxu0 0.0
        %673 = vmatpush1.msra.mxu0 0.0
        %674 = vmatprep.subr.mxu0 0.0
        %675 = vmatpush1.msra.mxu0 0.0
        %676 = vmatprep.subr.mxu0 0.0
        %677 = vmatpush1.msra.mxu0 0.0
        %678 = vmatprep.subr.mxu0 0.0
        %679 = vmatpush1.msra.mxu0 0.0
        %680 = vmatprep.subr.mxu0 0.0
        %681 = vmatpush1.msra.mxu0 0.0
        %682 = vmatprep.subr.mxu0 0.0
        %683 = vmatpush1.msra.mxu0 0.0
        %684 = vmatprep.subr.mxu0 0.0
        %685 = vmatpush1.msra.mxu0 0.0
        %686 = vmatprep.subr.mxu0 0.0
        %687 = vmatpush1.msra.mxu0 0.0
        %688 = vmatprep.subr.mxu0 0.0
        %689 = vmatpush1.msra.mxu0 0.0
        %690 = vmatprep.subr.mxu0 0.0
        %691 = vmatpush1.msra.mxu0 0.0
        %692 = vmatprep.subr.mxu0 0.0
        %693 = vmatpush1.msra.mxu0 0.0
        %694 = vmatprep.subr.mxu0 0.0
        %695 = vmatpush1.msra.mxu0 0.0
        %696 = vmatprep.subr.mxu0 0.0
        %697 = vmatpush1.msra.mxu0 0.0
        %698 = vmatprep.subr.mxu0 0.0
        %699 = vmatpush1.msra.mxu0 0.0
        %700 = vmatprep.subr.mxu0 0.0
        %701 = vmatpush1.msra.mxu0 0.0
        %702 = vmatprep.mubr.f32.mxu0 0.0
        %703 = vmatmul.mubr.f32.gmra.mrb[0].mxu0 %v636
        %v704 = vpop.f32.mrb[0].mxu0
        %v705 = vadd.f32 0.0, %v704
        %v706 = vpop.f32.mrb[0].mxu0
        %707 = vdwg.mxu0
        %708 = vst.msk [vmem:[%s369] sm:$0xff] %vm539, %v559
        %709 = vst.msk [vmem:[%s369 + $0x8] sm:$0xff] %vm539, %v561
        %710 = vst.msk [vmem:[%s362] sm:$0xff] %vm382, %v632
        %711 = vst.msk [vmem:[%s362 + $0x8] sm:$0xff] %vm382, %v705
        %s712 = sand.u32 %s158, 1
        %s713 = scalar_lea.sflag [#allocation4], %s712
        %s714 = sand.u32 %s158, 1
        %s715 = smul.addr %s714, 16
        %s716 = scalar_lea.vmem [#allocation10], %s715
        %s717 = sand.u32 %s186, 1
        %s718 = scalar_lea.sflag [#allocation12], %s717
        %s719 = sand.u32 %s186, 1
        %s720 = smul.addr %s719, 16
        %s721 = scalar_lea.vmem [#allocation11], %s720
        // Predicated region
        $region53: #{tpu_custom_call.1} parent=35 // pred_check
          %p722 = pneg %p168
        $region54: #{tpu_custom_call.1} parent=35 // pred_check_branch
          %724 = sbr.rel (%p722) target = $region56
        $region55: #{tpu_custom_call.1} parent=35 // pred_region
          %s725 = smul.u32 2, %s34
          %s727 = ssub.s32 256, 256
          %728 = vsyncadd %s713, %s727
          %s729 = sadd.s32 %s35, %s725
          %s730 = smul.addr %s729, 128
          %s731 = scalar_lea.hbm %s4, %s730
          %s732 = sshll.u32 %s716, 4
          %s733 = int_to_ptr.vmem [resolvable:$true] %s732
          %738 = dma.vmem_to_hbm [thread:$0]  %s733, 256, %s731, %s713, 128, 128, 8
        $region56: #{tpu_custom_call.1} parent=35 // pred_fallthru
          _
        // Predicated region
        $region57: #{tpu_custom_call.1} parent=35 // pred_check
          %p739 = pneg %p196
        $region58: #{tpu_custom_call.1} parent=35 // pred_check_branch
          %741 = sbr.rel (%p739) target = $region60
        $region59: #{tpu_custom_call.1} parent=35 // pred_region
          %s742 = smul.u32 2, %s34
          %s744 = ssub.s32 256, 256
          %745 = vsyncadd %s718, %s744
          %s746 = sadd.s32 %s35, %s742
          %s747 = smul.addr %s746, 128
          %s748 = scalar_lea.hbm %s5, %s747
          %s749 = sshll.u32 %s721, 4
          %s750 = int_to_ptr.vmem [resolvable:$true] %s749
          %755 = dma.vmem_to_hbm [thread:$0]  %s750, 256, %s748, %s718, 128, 128, 8
        $region60: #{tpu_custom_call.1} parent=35 // pred_fallthru
          _
      $region36: #{tpu_custom_call.1} parent=5 // pred_fallthru
        _
      %p756 = scmp.le.s32.totalorder 2, %s25
      // Predicated region
      $region61: #{tpu_custom_call.1} parent=5 // pred_check
        %p757 = pneg %p756
      $region62: #{tpu_custom_call.1} parent=5 // pred_check_branch
        %759 = sbr.rel (%p757) target = $region64
      $region63: #{tpu_custom_call.1} parent=5 // pred_region
        %s760 = ssub.s32 %s25, 2
        // Predicated region
        $region65: #{tpu_custom_call.1} parent=63 // pred_check
          %p761 = pneg %p174
        $region66: #{tpu_custom_call.1} parent=63 // pred_check_branch
          %763 = sbr.rel (%p761) target = $region68
        $region67: #{tpu_custom_call.1} parent=63 // pred_region
          %s764 = sand.u32 %s159, 1
          %s765 = scalar_lea.sflag [#allocation4], %s764
          %s766 = sand.u32 %s159, 1
          %s767 = smul.addr %s766, 16
          %s768 = scalar_lea.vmem [#allocation10], %s767
          %769 = dma.done %s765, 256
        $region68: #{tpu_custom_call.1} parent=63 // pred_fallthru
          _
        // Predicated region
        $region69: #{tpu_custom_call.1} parent=63 // pred_check
          %p770 = pneg %p202
        $region70: #{tpu_custom_call.1} parent=63 // pred_check_branch
          %772 = sbr.rel (%p770) target = $region72
        $region71: #{tpu_custom_call.1} parent=63 // pred_region
          %s773 = sand.u32 %s187, 1
          %s774 = scalar_lea.sflag [#allocation12], %s773
          %s775 = sand.u32 %s187, 1
          %s776 = smul.addr %s775, 16
          %s777 = scalar_lea.vmem [#allocation11], %s776
          %778 = dma.done %s774, 256
        $region72: #{tpu_custom_call.1} parent=63 // pred_fallthru
          _
      $region64: #{tpu_custom_call.1} parent=5 // pred_fallthru
        _
    $region6: #{tpu_custom_call.1} parent=1 // loop_footer
      %s29 = sadd.s32 1, %s25
    $region7: #{tpu_custom_call.1} parent=1 // loop_footer_branch
      %24 = sbr.rel target = $region3
    $region8: #{tpu_custom_call.1} parent=1 // loop_exit
      _
    %779 = vsyncpa [#allocation3], 1
    %s780 = scalar_lea.sflag [#allocation3], 1
    %781 = vsyncpa %s780, 1
    %782 = vsyncpa [#allocation6], 1
    %s783 = scalar_lea.sflag [#allocation6], 1
    %784 = vsyncpa %s783, 1
    %785 = vsyncpa [#allocation9], 1
    %786 = vsyncpa [#allocation4], 1
    %s787 = scalar_lea.sflag [#allocation4], 1
    %788 = vsyncpa %s787, 1
    %789 = vsyncpa [#allocation12], 1
    %s790 = scalar_lea.sflag [#allocation12], 1
    %791 = vsyncpa %s790, 1

</llo_original>
